<compile_context>
chip_gen: v6e
topology: v6e:2x2x1
jax: 0.10.0
libtpu: 0.0.40
codegen_flags: <defaults>
</compile_context>

<pallas_src>
import jax
import jax.numpy as jnp
from jax.experimental import pallas as pl
from jax.experimental.pallas import tpu as pltpu

EPS = 1e-5


def _conv_stats_kernel(p_ref, w_ref, conv_ref, sum_ref, sq_ref):
    """Pass 1: fused conv matmul + streaming per-channel sum / sum-of-squares.

    p_ref:    (TM, 9*Cin)       im2col patch tile
    w_ref:    (9*Cin, Cout_pad) fused conv weight (resident across the grid)
    conv_ref: (TM, Cout_pad)    conv output tile (f32)
    sum_ref:  (1, Cout_pad)     per-channel sum      (accumulated over the grid)
    sq_ref:   (1, Cout_pad)     per-channel sum(x^2) (accumulated over the grid)
    """
    i = pl.program_id(0)

    @pl.when(i == 0)
    def _():
        sum_ref[...] = jnp.zeros_like(sum_ref)
        sq_ref[...] = jnp.zeros_like(sq_ref)

    # Single MXU matmul with K = 9*Cin (no operand upcast; f32 accumulation).
    conv = jnp.dot(p_ref[...], w_ref[...], preferred_element_type=jnp.float32)
    conv_ref[...] = conv

    # Streaming BN statistics (var = E[x^2] - mean^2, finalized in the wrapper).
    sum_ref[...] += jnp.sum(conv, axis=0, keepdims=True)
    sq_ref[...] += jnp.sum(conv * conv, axis=0, keepdims=True)


def _bn_relu_kernel(conv_ref, scale_ref, shift_ref, o_ref):
    """Pass 2: y = relu(conv * scale + shift) with folded BN affine."""
    y = conv_ref[...] * scale_ref[...] + shift_ref[...]
    o_ref[...] = jnp.maximum(y, 0.0).astype(o_ref.dtype)


def conv_bn_relu(x_nchw, weight, bias, gamma, beta, padding=1, tm=256):
    """x_nchw: (N, Cin, H, W); weight: (Cout, Cin, 3, 3) (PyTorch layouts)."""
    N, Cin, H, W = x_nchw.shape
    Cout = weight.shape[0]

    # 3x3, stride=1 output spatial size (correct for any padding).
    Ho = H + 2 * padding - 2
    Wo = W + 2 * padding - 2
    M = N * Ho * Wo
    K = 9 * Cin

    cout_pad = ((Cout + 127) // 128) * 128          # lane-dense output channels
    m_pad = ((M + tm - 1) // tm) * tm               # grid-aligned row count

    # --- wrapper glue: NCHW -> NHWC, zero pad, single (M, 9*Cin) im2col matrix ---
    x = jnp.transpose(x_nchw, (0, 2, 3, 1))         # NHWC
    xp = jnp.pad(x, ((0, 0), (padding, padding), (padding, padding), (0, 0)))
    patches = jnp.concatenate(
        [
            xp[:, kh:kh + Ho, kw:kw + Wo, :].reshape(M, Cin)
            for kh in range(3)
            for kw in range(3)
        ],
        axis=1,
    )  # (M, 9*Cin), tap-major / channel-minor
    patches = jnp.pad(patches, ((0, m_pad - M), (0, 0)))

    # Fused weight: (3, 3, Cin, Cout) -> (9*Cin, Cout), tap-major to match patches.
    w_mat = jnp.transpose(weight, (2, 3, 1, 0)).reshape(K, Cout)
    w_mat = jnp.pad(w_mat, ((0, 0), (0, cout_pad - Cout)))

    # Conv bias is exactly cancelled by training-mode BN mean subtraction.
    del bias

    grid = (m_pad // tm,)

    conv_out, ch_sum, ch_sq = pl.pallas_call(
        _conv_stats_kernel,
        out_shape=(
            jax.ShapeDtypeStruct((m_pad, cout_pad), jnp.float32),
            jax.ShapeDtypeStruct((1, cout_pad), jnp.float32),
            jax.ShapeDtypeStruct((1, cout_pad), jnp.float32),
        ),
        grid_spec=pltpu.PrefetchScalarGridSpec(
            num_scalar_prefetch=0,
            grid=grid,
            in_specs=[
                pl.BlockSpec((tm, K), lambda i: (i, 0)),
                pl.BlockSpec((K, cout_pad), lambda i: (0, 0)),
            ],
            out_specs=(
                pl.BlockSpec((tm, cout_pad), lambda i: (i, 0)),
                pl.BlockSpec((1, cout_pad), lambda i: (0, 0)),
                pl.BlockSpec((1, cout_pad), lambda i: (0, 0)),
            ),
        ),
        compiler_params=pltpu.CompilerParams(
            dimension_semantics=("arbitrary",),  # stats are reduced over this axis
        ),
    )(patches, w_mat)

    # --- finalize BN (training semantics, biased variance) on tiny vectors ---
    # Padded rows of `patches` are all-zero (and bias is dropped), so they add 0 to
    # both sums; dividing by the real M keeps the statistics exact.
    gamma_pad = jnp.pad(gamma.astype(jnp.float32), (0, cout_pad - Cout))
    beta_pad = jnp.pad(beta.astype(jnp.float32), (0, cout_pad - Cout))
    mean = ch_sum[0] / M
    var = jnp.maximum(ch_sq[0] / M - mean * mean, 0.0)
    scale = gamma_pad * jax.lax.rsqrt(var + EPS)
    shift = beta_pad - mean * scale

    out_flat = pl.pallas_call(
        _bn_relu_kernel,
        out_shape=jax.ShapeDtypeStruct((m_pad, cout_pad), x_nchw.dtype),
        grid_spec=pltpu.PrefetchScalarGridSpec(
            num_scalar_prefetch=0,
            grid=grid,
            in_specs=[
                pl.BlockSpec((tm, cout_pad), lambda i: (i, 0)),
                pl.BlockSpec((1, cout_pad), lambda i: (0, 0)),
                pl.BlockSpec((1, cout_pad), lambda i: (0, 0)),
            ],
            out_specs=pl.BlockSpec((tm, cout_pad), lambda i: (i, 0)),
        ),
        compiler_params=pltpu.CompilerParams(
            dimension_semantics=("parallel",),
        ),
    )(conv_out, scale.reshape(1, cout_pad), shift.reshape(1, cout_pad))

    out_nhwc = out_flat[:M, :Cout].reshape(N, Ho, Wo, Cout)
    return jnp.transpose(out_nhwc, (0, 3, 1, 2))  # back to NCHW


if __name__ == "__main__":
    key = jax.random.PRNGKey(0)
    k1, k2, k3, k4, k5 = jax.random.split(key, 5)

    N, Cin, H, W, Cout = 2, 4, 16, 16, 8
    x = jax.random.normal(k1, (N, Cin, H, W), jnp.float32)
    weight = 0.1 * jax.random.normal(k2, (Cout, Cin, 3, 3), jnp.float32)
    bias = 0.1 * jax.random.normal(k3, (Cout,), jnp.float32)
    gamma = 1.0 + 0.1 * jax.random.normal(k4, (Cout,), jnp.float32)
    beta = 0.1 * jax.random.normal(k5, (Cout,), jnp.float32)

    out = jax.block_until_ready(conv_bn_relu(x, weight, bias, gamma, beta))

    # Pure-JAX reference (conv + bias + training-mode BN + ReLU).
    conv = jax.lax.conv_general_dilated(
        x, weight, window_strides=(1, 1), padding=((1, 1), (1, 1)),
        dimension_numbers=("NCHW", "OIHW", "NCHW"),
    ) + bias.reshape(1, Cout, 1, 1)
    mean = jnp.mean(conv, axis=(0, 2, 3), keepdims=True)
    var = jnp.mean((conv - mean) ** 2, axis=(0, 2, 3), keepdims=True)
    ref = jnp.maximum(
        (conv - mean) * jax.lax.rsqrt(var + EPS) * gamma.reshape(1, Cout, 1, 1)
        + beta.reshape(1, Cout, 1, 1),
        0.0,
    )

    assert out.shape == (N, Cout, H, W)
    assert float(jnp.max(jnp.abs(out - ref))) < 1e-3
    print("KERNEL_OK")
</pallas_src>

<mosaic_0001>
module attributes {stable_mosaic.version = 11 : i64} {
  func.func @_conv_stats_kernel(%arg0: i32, %arg1: memref<256x36xf32, #tpu.memory_space<vmem>>, %arg2: memref<36x128xf32, #tpu.memory_space<vmem>>, %arg3: memref<256x128xf32, #tpu.memory_space<vmem>>, %arg4: memref<1x128xf32, #tpu.memory_space<vmem>>, %arg5: memref<1x128xf32, #tpu.memory_space<vmem>>) attributes {dimension_semantics = [#tpu.dimension_semantics<arbitrary>], iteration_bounds = array<i64: 2>, scalar_prefetch = 0 : i64, scratch_operands = 0 : i64, tpu.core_type = #tpu.core_type<tc>, window_params = [{transform_indices = @transform_0, window_bounds = array<i64: 256, 36>}, {pipeline_mode = #tpu.pipeline_mode<synchronous>, transform_indices = @transform_1, window_bounds = array<i64: 36, 128>}, {transform_indices = @transform_2, window_bounds = array<i64: 256, 128>}, {pipeline_mode = #tpu.pipeline_mode<synchronous>, transform_indices = @transform_3, window_bounds = array<i64: 1, 128>}, {pipeline_mode = #tpu.pipeline_mode<synchronous>, transform_indices = @transform_4, window_bounds = array<i64: 1, 128>}]} {
    %c0_i32 = arith.constant 0 : i32
    %0 = arith.cmpi eq, %arg0, %c0_i32 : i32
    %1 = arith.extui %0 : i1 to i32
    %c0_i32_0 = arith.constant 0 : i32
    %2 = arith.cmpi ne, %1, %c0_i32_0 : i32
    scf.if %2 {
      %cst_16 = arith.constant 0.000000e+00 : f32
      %18 = vector.broadcast %cst_16 : f32 to vector<1x128xf32>
      %c0_17 = arith.constant 0 : index
      %c0_18 = arith.constant 0 : index
      %19 = vector.load %arg4[%c0_17, %c0_18] : memref<1x128xf32, #tpu.memory_space<vmem>>, vector<1x128xf32>
      tpu.vector_store %arg4[%c0_17, %c0_18], %18 {strides = array<i32>} : memref<1x128xf32, #tpu.memory_space<vmem>>, vector<1x128xf32>,
      %cst_19 = arith.constant 0.000000e+00 : f32
      %20 = vector.broadcast %cst_19 : f32 to vector<1x128xf32>
      %c0_20 = arith.constant 0 : index
      %c0_21 = arith.constant 0 : index
      %21 = vector.load %arg5[%c0_20, %c0_21] : memref<1x128xf32, #tpu.memory_space<vmem>>, vector<1x128xf32>
      tpu.vector_store %arg5[%c0_20, %c0_21], %20 {strides = array<i32>} : memref<1x128xf32, #tpu.memory_space<vmem>>, vector<1x128xf32>,
    } else {
    }
    %c0 = arith.constant 0 : index
    %c0_1 = arith.constant 0 : index
    %3 = vector.load %arg1[%c0, %c0_1] : memref<256x36xf32, #tpu.memory_space<vmem>>, vector<256x36xf32>
    %c0_2 = arith.constant 0 : index
    %c0_3 = arith.constant 0 : index
    %4 = vector.load %arg2[%c0_2, %c0_3] : memref<36x128xf32, #tpu.memory_space<vmem>>, vector<36x128xf32>
    %cst = arith.constant dense<0.000000e+00> : vector<256x128xf32>
    %5 = tpu.matmul %3, %4, %cst {dimension_numbers = #tpu.dot_dimension_numbers<[1], [0], [0], [1], [0, 0, 1, 1], [], []>} : vector<256x36xf32>, vector<36x128xf32>, vector<256x128xf32> -> vector<256x128xf32>
    %c0_4 = arith.constant 0 : index
    %c0_5 = arith.constant 0 : index
    %6 = vector.load %arg3[%c0_4, %c0_5] : memref<256x128xf32, #tpu.memory_space<vmem>>, vector<256x128xf32>
    tpu.vector_store %arg3[%c0_4, %c0_5], %5 {strides = array<i32>} : memref<256x128xf32, #tpu.memory_space<vmem>>, vector<256x128xf32>,
    %c0_6 = arith.constant 0 : index
    %c0_7 = arith.constant 0 : index
    %7 = vector.load %arg4[%c0_6, %c0_7] : memref<1x128xf32, #tpu.memory_space<vmem>>, vector<1x128xf32>
    %cst_8 = arith.constant dense<0.000000e+00> : vector<128xf32>
    %8 = vector.multi_reduction <add>, %5, %cst_8 [0] : vector<256x128xf32> to vector<128xf32>
    %9 = vector.shape_cast %8 : vector<128xf32> to vector<1x128xf32>
    %10 = arith.addf %7, %9 : vector<1x128xf32>
    %c0_9 = arith.constant 0 : index
    %c0_10 = arith.constant 0 : index
    %11 = vector.load %arg4[%c0_9, %c0_10] : memref<1x128xf32, #tpu.memory_space<vmem>>, vector<1x128xf32>
    tpu.vector_store %arg4[%c0_9, %c0_10], %10 {strides = array<i32>} : memref<1x128xf32, #tpu.memory_space<vmem>>, vector<1x128xf32>,
    %c0_11 = arith.constant 0 : index
    %c0_12 = arith.constant 0 : index
    %12 = vector.load %arg5[%c0_11, %c0_12] : memref<1x128xf32, #tpu.memory_space<vmem>>, vector<1x128xf32>
    %13 = arith.mulf %5, %5 : vector<256x128xf32>
    %cst_13 = arith.constant dense<0.000000e+00> : vector<128xf32>
    %14 = vector.multi_reduction <add>, %13, %cst_13 [0] : vector<256x128xf32> to vector<128xf32>
    %15 = vector.shape_cast %14 : vector<128xf32> to vector<1x128xf32>
    %16 = arith.addf %12, %15 : vector<1x128xf32>
    %c0_14 = arith.constant 0 : index
    %c0_15 = arith.constant 0 : index
    %17 = vector.load %arg5[%c0_14, %c0_15] : memref<1x128xf32, #tpu.memory_space<vmem>>, vector<1x128xf32>
    tpu.vector_store %arg5[%c0_14, %c0_15], %16 {strides = array<i32>} : memref<1x128xf32, #tpu.memory_space<vmem>>, vector<1x128xf32>,
    return
  }
  func.func @transform_0(%arg0: i32) -> (i32, i32) {
    %c0_i32 = arith.constant 0 : i32
    %c0_i32_0 = arith.constant 0 : i32
    return %arg0, %c0_i32 : i32, i32
  }
  func.func @transform_1(%arg0: i32) -> (i32, i32) {
    %c0_i32 = arith.constant 0 : i32
    %c0_i32_0 = arith.constant 0 : i32
    %c0_i32_1 = arith.constant 0 : i32
    return %c0_i32, %c0_i32_0 : i32, i32
  }
  func.func @transform_2(%arg0: i32) -> (i32, i32) {
    %c0_i32 = arith.constant 0 : i32
    %c0_i32_0 = arith.constant 0 : i32
    return %arg0, %c0_i32 : i32, i32
  }
  func.func @transform_3(%arg0: i32) -> (i32, i32) {
    %c0_i32 = arith.constant 0 : i32
    %c0_i32_0 = arith.constant 0 : i32
    %c0_i32_1 = arith.constant 0 : i32
    return %c0_i32, %c0_i32_0 : i32, i32
  }
  func.func @transform_4(%arg0: i32) -> (i32, i32) {
    %c0_i32 = arith.constant 0 : i32
    %c0_i32_0 = arith.constant 0 : i32
    %c0_i32_1 = arith.constant 0 : i32
    return %c0_i32, %c0_i32_0 : i32, i32
  }
}

</mosaic_0001>

<llo_original>
// kernel: tpu_custom_call.1
$region0: #{tpu_custom_call.1}
  #allocation0 [shape = 'u32[]', space=smem, size = 0x4, offset = 0x4, fixed_abs, tag = 'smem constant byte address 0x4 - core index']
  #allocation1 [shape = 'u32[144,128]{1,0:T(1,128)}', space=vmem, size = 0x12000, scoped, tag = 'internal scratch']
  %s0 = inlined_call_operand.vmem [shape: f32[512,36], index: 0, kind: input, shape index: {}]
  %s1 = inlined_call_operand.vmem [shape: f32[36,128], index: 1, kind: input, shape index: {}]
  %s2 = inlined_call_operand.hbm [shape: f32[512,128], index: 2, kind: output, shape index: {0}]
  %s3 = inlined_call_operand.hbm [shape: f32[1,128], index: 3, kind: output, shape index: {1}]
  %s4 = inlined_call_operand.hbm [shape: f32[1,128], index: 4, kind: output, shape index: {2}]
  %5 = xla_tuple %s2, %s3, %s4
  %s6 = sld [smem:[#allocation0]]
  $region61: #{tpu_custom_call.1} parent=0
    _
  %s8 = ssub.s32 1, %s6
  %s9 = scalar_select 0, %s8, %s6
  $region1: #{tpu_custom_call.1} parent=0
    #allocation2 [shape = 'u8[262144]{0}', space=vmem, size = 0x40000, scoped, tag = 'output window, operand 0']
    #allocation3 [shape = 's32[2]{0}', space=sflag, size = 0x8, scoped, tag = 'scoped memory for tpu_custom_call.1']
    #allocation4 [shape = 'u8[512]{0}', space=vmem, size = 0x400, scoped, tag = 'output window, operand 1, single buffered']
    #allocation5 [shape = 's32[1]{0}', space=sflag, size = 0x4, scoped, tag = 'scoped memory for tpu_custom_call.1']
    #allocation6 [shape = 'u8[512]{0}', space=vmem, size = 0x400, scoped, tag = 'output window, operand 2, single buffered']
    %10 = vsyncpa [#allocation3], 0
    %s11 = scalar_lea.sflag [#allocation3], 1
    %12 = vsyncpa %s11, 0
    %13 = vsyncpa [#allocation5], 0
    loop: start=0, step=1, limit=4
    $region2: #{tpu_custom_call.1} parent=1 // loop_pre_header
      _
    $region3: #{tpu_custom_call.1} parent=1 // loop_header
      %s15 = sphi 0, %s19
      %p16 = scmp.ge.s32.totalorder %s15, 4
      %s25 = sphi 0, %s27
      %s28 = sphi 0, %s25
      %s29 = sphi 0, %s28
      %s45 = sphi 0, %s29
      %s49 = sphi 0, %s49
      %s51 = sphi 0, %s49
      %s52 = sphi 0, %s51
      %s66 = sphi 0, %s52
      %s72 = sphi 0, %s74
      %s75 = sphi 0, %s72
      %s76 = sphi 0, %s75
      %s92 = sphi 0, %s76
      %s96 = sphi 0, %s96
      %s98 = sphi 0, %s96
      %s99 = sphi 0, %s98
      %s113 = sphi 0, %s99
      %s117 = sphi 0, %s117
      %s119 = sphi 0, %s117
      %s120 = sphi 0, %s119
      %s134 = sphi 0, %s120
    $region4: #{tpu_custom_call.1} parent=1 // loop_header_branch
      %18 = sbr.rel (%p16) target = $region8
    $region5: #{tpu_custom_call.1} parent=1 // loop_body
      %s20 = ssub.s32 %s15, 1
      %s21 = ssub.s32 %s15, 2
      %s22 = sadd.s32 %s15, 1
      %s23 = ssub.s32 %s15, %s22
      %p24 = scmp.eq.s32.totalorder %s23, 0
      %s26 = sadd.s32 %s25, 1
      %s27 = scalar_select %p24, %s25, %s26
      %p30 = pneg %p24
      %p31 = scmp.eq.s32.totalorder %s15, 1
      %p32 = por %p30, %p31
      %p33 = scmp.ne.s32.totalorder %s25, %s28
      %p34 = scmp.eq.s32.totalorder %s15, 0
      %p35 = por %p33, %p34
      %p36 = scmp.ne.s32.totalorder %s25, %s28
      %p37 = scmp.eq.s32.totalorder %s20, 1
      %p38 = por %p36, %p37
      %p39 = scmp.ne.s32.totalorder %s28, %s29
      %p40 = scmp.eq.s32.totalorder %s20, 0
      %p41 = por %p39, %p40
      %p42 = scmp.ne.s32.totalorder %s28, %s29
      %p43 = scmp.eq.s32.totalorder %s21, 1
      %p44 = por %p42, %p43
      %p46 = scmp.ne.s32.totalorder %s29, %s45
      %p47 = scmp.eq.s32.totalorder %s21, 0
      %p48 = por %p46, %p47
      %s50 = sadd.s32 %s49, 1
      %p53 = scmp.eq.s32.totalorder %s15, 1
      %p54 = scmp.ne.s32.totalorder %s49, %s51
      %p55 = scmp.eq.s32.totalorder %s15, 0
      %p56 = por %p54, %p55
      %p57 = scmp.ne.s32.totalorder %s49, %s51
      %p58 = scmp.eq.s32.totalorder %s20, 1
      %p59 = por %p57, %p58
      %p60 = scmp.ne.s32.totalorder %s51, %s52
      %p61 = scmp.eq.s32.totalorder %s20, 0
      %p62 = por %p60, %p61
      %p63 = scmp.ne.s32.totalorder %s51, %s52
      %p64 = scmp.eq.s32.totalorder %s21, 1
      %p65 = por %p63, %p64
      %p67 = scmp.ne.s32.totalorder %s52, %s66
      %p68 = scmp.eq.s32.totalorder %s21, 0
      %p69 = por %p67, %p68
      %s70 = ssub.s32 %s15, %s22
      %p71 = scmp.eq.s32.totalorder %s70, 0
      %s73 = sadd.s32 %s72, 1
      %s74 = scalar_select %p71, %s72, %s73
      %p77 = pneg %p71
      %p78 = scmp.eq.s32.totalorder %s15, 1
      %p79 = por %p77, %p78
      %p80 = scmp.ne.s32.totalorder %s72, %s75
      %p81 = scmp.eq.s32.totalorder %s15, 0
      %p82 = por %p80, %p81
      %p83 = scmp.ne.s32.totalorder %s72, %s75
      %p84 = scmp.eq.s32.totalorder %s20, 1
      %p85 = por %p83, %p84
      %p86 = scmp.ne.s32.totalorder %s75, %s76
      %p87 = scmp.eq.s32.totalorder %s20, 0
      %p88 = por %p86, %p87
      %p89 = scmp.ne.s32.totalorder %s75, %s76
      %p90 = scmp.eq.s32.totalorder %s21, 1
      %p91 = por %p89, %p90
      %p93 = scmp.ne.s32.totalorder %s76, %s92
      %p94 = scmp.eq.s32.totalorder %s21, 0
      %p95 = por %p93, %p94
      %s97 = sadd.s32 %s96, 1
      %p100 = scmp.eq.s32.totalorder %s15, 1
      %p101 = scmp.ne.s32.totalorder %s96, %s98
      %p102 = scmp.eq.s32.totalorder %s15, 0
      %p103 = por %p101, %p102
      %p104 = scmp.ne.s32.totalorder %s96, %s98
      %p105 = scmp.eq.s32.totalorder %s20, 1
      %p106 = por %p104, %p105
      %p107 = scmp.ne.s32.totalorder %s98, %s99
      %p108 = scmp.eq.s32.totalorder %s20, 0
      %p109 = por %p107, %p108
      %p110 = scmp.ne.s32.totalorder %s98, %s99
      %p111 = scmp.eq.s32.totalorder %s21, 1
      %p112 = por %p110, %p111
      %p114 = scmp.ne.s32.totalorder %s99, %s113
      %p115 = scmp.eq.s32.totalorder %s21, 0
      %p116 = por %p114, %p115
      %s118 = sadd.s32 %s117, 1
      %p121 = scmp.eq.s32.totalorder %s15, 1
      %p122 = scmp.ne.s32.totalorder %s117, %s119
      %p123 = scmp.eq.s32.totalorder %s15, 0
      %p124 = por %p122, %p123
      %p125 = scmp.ne.s32.totalorder %s117, %s119
      %p126 = scmp.eq.s32.totalorder %s20, 1
      %p127 = por %p125, %p126
      %p128 = scmp.ne.s32.totalorder %s119, %s120
      %p129 = scmp.eq.s32.totalorder %s20, 0
      %p130 = por %p128, %p129
      %p131 = scmp.ne.s32.totalorder %s119, %s120
      %p132 = scmp.eq.s32.totalorder %s21, 1
      %p133 = por %p131, %p132
      %p135 = scmp.ne.s32.totalorder %s120, %s134
      %p136 = scmp.eq.s32.totalorder %s21, 0
      %p137 = por %p135, %p136
      %p138 = scmp.le.s32.totalorder 1, %s15
      %p139 = scmp.lt.s32.totalorder %s15, 3
      %p140 = pnand %p138, %p139
      %p141 = pneg %p140
      // Predicated region
      $region9: #{tpu_custom_call.1} parent=5 // pred_check
        _
      $region10: #{tpu_custom_call.1} parent=5 // pred_check_branch
        %143 = sbr.rel (%p140) target = $region12
      $region11: #{tpu_custom_call.1} parent=5 // pred_region
        %s144 = ssub.s32 %s15, 1
        // Predicated region
        $region13: #{tpu_custom_call.1} parent=11 // pred_check
          %p145 = pneg %p62
        $region14: #{tpu_custom_call.1} parent=11 // pred_check_branch
          %147 = sbr.rel (%p145) target = $region16
        $region15: #{tpu_custom_call.1} parent=11 // pred_region
          _
        $region16: #{tpu_custom_call.1} parent=11 // pred_fallthru
          _
      $region12: #{tpu_custom_call.1} parent=5 // pred_fallthru
        _
      %p148 = scmp.lt.s32.totalorder %s15, 2
      // Predicated region
      $region17: #{tpu_custom_call.1} parent=5 // pred_check
        %p149 = pneg %p148
      $region18: #{tpu_custom_call.1} parent=5 // pred_check_branch
        %151 = sbr.rel (%p149) target = $region20
      $region19: #{tpu_custom_call.1} parent=5 // pred_region
        // Predicated region
        $region21: #{tpu_custom_call.1} parent=19 // pred_check
          %p152 = pneg %p35
        $region22: #{tpu_custom_call.1} parent=19 // pred_check_branch
          %154 = sbr.rel (%p152) target = $region24
        $region23: #{tpu_custom_call.1} parent=19 // pred_region
          %s155 = smul.u32 32, %s15
          %p156 = scmp.lt.s32.totalorder %s155, 63
          %s157 = scalar_select %p156, %s155, 63
          %s158 = smul.addr %s157, 8
          %s159 = scalar_lea.vmem %s0, %s158
          %s160 = smul.u32 32, %s15
        $region24: #{tpu_custom_call.1} parent=19 // pred_fallthru
          _
      $region20: #{tpu_custom_call.1} parent=5 // pred_fallthru
        _
      %p161 = scmp.le.s32.totalorder 1, %s15
      %p162 = scmp.lt.s32.totalorder %s15, 3
      %p163 = pnand %p161, %p162
      %p164 = pneg %p163
      // Predicated region
      $region25: #{tpu_custom_call.1} parent=5 // pred_check
        _
      $region26: #{tpu_custom_call.1} parent=5 // pred_check_branch
        %166 = sbr.rel (%p163) target = $region28
      $region27: #{tpu_custom_call.1} parent=5 // pred_region
        %s167 = ssub.s32 %s15, 1
        %s168 = smul.u32 32, %s20
        %p169 = scmp.lt.s32.totalorder %s168, 63
        %s170 = scalar_select %p169, %s168, 63
        %s171 = smul.addr %s170, 8
        %s172 = scalar_lea.vmem %s0, %s171
        %p173 = pneg %p41
        %p174 = pneg %p38
        %p175 = pneg %p62
        %p176 = pneg %p59
        %p177 = pneg %p88
        %p178 = pneg %p85
        %s179 = sand.u32 %s75, 1
        %s180 = scalar_lea.sflag [#allocation3], %s179
        %s181 = sand.u32 %s75, 1
        %s182 = smul.addr %s181, 256
        %s183 = scalar_lea.vmem [#allocation2], %s182
        %p184 = pneg %p109
        %p185 = pneg %p106
        %p186 = pneg %p130
        %p187 = pneg %p127
        %s188 = smul.u32 32, %s20
        %p189 = scmp.lt.s32.totalorder %s188, 63
        %s190 = scalar_select %p189, %s188, 63
        %s191 = smul.addr %s190, 8
        %s192 = scalar_lea.vmem %s0, %s191
        %s193 = smul.u32 32, %s20
        %s194 = smul.u32 32, %s20
        %p195 = scmp.eq.s32.totalorder %s20, 0
        // Predicated region
        $region29: #{tpu_custom_call.1} parent=27 // pred_check
          %p196 = pneg %p195
        $region30: #{tpu_custom_call.1} parent=27 // pred_check_branch
          %198 = sbr.rel (%p196) target = $region32
        $region31: #{tpu_custom_call.1} parent=27 // pred_region
          %199 = vst [vmem:[#allocation4] sm:$0x1] 0.0
          %200 = vst [vmem:[#allocation6] sm:$0x1] 0.0
        $region32: #{tpu_custom_call.1} parent=27 // pred_fallthru
          _
        %v201 = vld [vmem:[%s192] sm:$0xff]
        %v202 = vld [vmem:[%s192 + $0x8] sm:$0xff]
        %v203 = vld [vmem:[%s192 + $0x10] sm:$0xff]
        %v204 = vld [vmem:[%s192 + $0x18] sm:$0xff]
        %v205 = vld [vmem:[%s192 + $0x20] sm:$0xff]
        %v206 = vld [vmem:[%s192 + $0x28] sm:$0xff]
        %v207 = vld [vmem:[%s192 + $0x30] sm:$0xff]
        %v208 = vld [vmem:[%s192 + $0x38] sm:$0xff]
        %v209 = vld [vmem:[%s192 + $0x40] sm:$0xff]
        %v210 = vld [vmem:[%s192 + $0x48] sm:$0xff]
        %v211 = vld [vmem:[%s192 + $0x50] sm:$0xff]
        %v212 = vld [vmem:[%s192 + $0x58] sm:$0xff]
        %v213 = vld [vmem:[%s192 + $0x60] sm:$0xff]
        %v214 = vld [vmem:[%s192 + $0x68] sm:$0xff]
        %v215 = vld [vmem:[%s192 + $0x70] sm:$0xff]
        %v216 = vld [vmem:[%s192 + $0x78] sm:$0xff]
        %v217 = vld [vmem:[%s192 + $0x80] sm:$0xff]
        %v218 = vld [vmem:[%s192 + $0x88] sm:$0xff]
        %v219 = vld [vmem:[%s192 + $0x90] sm:$0xff]
        %v220 = vld [vmem:[%s192 + $0x98] sm:$0xff]
        %v221 = vld [vmem:[%s192 + $0xa0] sm:$0xff]
        %v222 = vld [vmem:[%s192 + $0xa8] sm:$0xff]
        %v223 = vld [vmem:[%s192 + $0xb0] sm:$0xff]
        %v224 = vld [vmem:[%s192 + $0xb8] sm:$0xff]
        %v225 = vld [vmem:[%s192 + $0xc0] sm:$0xff]
        %v226 = vld [vmem:[%s192 + $0xc8] sm:$0xff]
        %v227 = vld [vmem:[%s192 + $0xd0] sm:$0xff]
        %v228 = vld [vmem:[%s192 + $0xd8] sm:$0xff]
        %v229 = vld [vmem:[%s192 + $0xe0] sm:$0xff]
        %v230 = vld [vmem:[%s192 + $0xe8] sm:$0xff]
        %v231 = vld [vmem:[%s192 + $0xf0] sm:$0xff]
        %v232 = vld [vmem:[%s192 + $0xf8] sm:$0xff]
        %v233 = vld [vmem:[%s1] sm:$0xff]
        %v234 = vld [vmem:[%s1 + $0x8] sm:$0xff]
        %v235 = vld [vmem:[%s1 + $0x10] sm:$0xff]
        %v236 = vld [vmem:[%s1 + $0x18] sm:$0xff]
        %v237 = vld [vmem:[%s1 + $0x20] sm:$0xf]
        %vm238 = vcmask 293888
        %v240 = vsel %vm238, %v201, 0
        %v243 = vsel %vm238, %v202, 0
        %v246 = vsel %vm238, %v203, 0
        %v249 = vsel %vm238, %v204, 0
        %v252 = vsel %vm238, %v205, 0
        %v255 = vsel %vm238, %v206, 0
        %v258 = vsel %vm238, %v207, 0
        %v261 = vsel %vm238, %v208, 0
        %v264 = vsel %vm238, %v209, 0
        %v267 = vsel %vm238, %v210, 0
        %v270 = vsel %vm238, %v211, 0
        %v273 = vsel %vm238, %v212, 0
        %v276 = vsel %vm238, %v213, 0
        %v279 = vsel %vm238, %v214, 0
        %v282 = vsel %vm238, %v215, 0
        %v285 = vsel %vm238, %v216, 0
        %v288 = vsel %vm238, %v217, 0
        %v291 = vsel %vm238, %v218, 0
        %v294 = vsel %vm238, %v219, 0
        %v297 = vsel %vm238, %v220, 0
        %v300 = vsel %vm238, %v221, 0
        %v303 = vsel %vm238, %v222, 0
        %v306 = vsel %vm238, %v223, 0
        %v309 = vsel %vm238, %v224, 0
        %v312 = vsel %vm238, %v225, 0
        %v315 = vsel %vm238, %v226, 0
        %v318 = vsel %vm238, %v227, 0
        %v321 = vsel %vm238, %v228, 0
        %v324 = vsel %vm238, %v229, 0
        %v327 = vsel %vm238, %v230, 0
        %v330 = vsel %vm238, %v231, 0
        %v333 = vsel %vm238, %v232, 0
        %vm335 = vcmask 1043456
        %v337 = vsel %vm335, %v237, 0
        %339 = vmatprep.subr.mxu0 0.0
        %340 = vmatpush1.msra.mxu0 0.0
        %341 = vmatprep.subr.mxu0 0.0
        %342 = vmatpush1.msra.mxu0 0.0
        %343 = vmatprep.subr.mxu0 0.0
        %344 = vmatpush1.msra.mxu0 0.0
        %345 = vmatprep.subr.mxu0 0.0
        %346 = vmatpush1.msra.mxu0 0.0
        %347 = vmatprep.subr.mxu0 0.0
        %348 = vmatpush1.msra.mxu0 0.0
        %349 = vmatprep.subr.mxu0 0.0
        %350 = vmatpush1.msra.mxu0 0.0
        %351 = vmatprep.subr.mxu0 0.0
        %352 = vmatpush1.msra.mxu0 0.0
        %353 = vmatprep.subr.mxu0 0.0
        %354 = vmatpush1.msra.mxu0 0.0
        %355 = vmatprep.subr.mxu0 0.0
        %356 = vmatpush1.msra.mxu0 0.0
        %357 = vmatprep.subr.mxu0 0.0
        %358 = vmatpush1.msra.mxu0 0.0
        %359 = vmatprep.subr.mxu0 0.0
        %360 = vmatpush1.msra.mxu0 0.0
        %361 = vmatprep.subr.mxu0 0.0
        %362 = vmatpush1.msra.mxu0 %v337
        %363 = vmatprep.subr.mxu0 0.0
        %364 = vmatpush1.msra.mxu0 %v236
        %365 = vmatprep.subr.mxu0 0.0
        %366 = vmatpush1.msra.mxu0 %v235
        %367 = vmatprep.subr.mxu0 0.0
        %368 = vmatpush1.msra.mxu0 %v234
        %369 = vmatprep.subr.mxu0 0.0
        %370 = vmatpush1.msra.mxu0 %v233
        %371 = vmatprep.subr.mxu0 0.0
        %372 = vmatpush2.msra.mxu0 0.0
        %373 = vmatprep.subr.mxu0 0.0
        %374 = vmatpush2.msra.mxu0 0.0
        %375 = vmatprep.subr.mxu0 0.0
        %376 = vmatpush2.msra.mxu0 0.0
        %377 = vmatprep.subr.mxu0 0.0
        %378 = vmatpush2.msra.mxu0 0.0
        %379 = vmatprep.subr.mxu0 0.0
        %380 = vmatpush2.msra.mxu0 0.0
        %381 = vmatprep.subr.mxu0 0.0
        %382 = vmatpush2.msra.mxu0 0.0
        %383 = vmatprep.subr.mxu0 0.0
        %384 = vmatpush2.msra.mxu0 0.0
        %385 = vmatprep.subr.mxu0 0.0
        %386 = vmatpush2.msra.mxu0 0.0
        %387 = vmatprep.subr.mxu0 0.0
        %388 = vmatpush2.msra.mxu0 0.0
        %389 = vmatprep.subr.mxu0 0.0
        %390 = vmatpush2.msra.mxu0 0.0
        %391 = vmatprep.subr.mxu0 0.0
        %392 = vmatpush2.msra.mxu0 0.0
        %393 = vmatprep.subr.mxu0 0.0
        %394 = vmatpush2.msra.mxu0 0.0
        %395 = vmatprep.subr.mxu0 0.0
        %396 = vmatpush2.msra.mxu0 0.0
        %397 = vmatprep.subr.mxu0 0.0
        %398 = vmatpush2.msra.mxu0 0.0
        %399 = vmatprep.subr.mxu0 0.0
        %400 = vmatpush2.msra.mxu0 0.0
        %401 = vmatprep.subr.mxu0 0.0
        %402 = vmatpush2.msra.mxu0 0.0
        %403 = vmatprep.mubr.f32.mxu0 0.0
        %404 = vmatmul.mubr.f32.gmra.mxu0 %v240
        %v405 = vpop.f32.mrf.mxu0
        %v406 = vadd.f32 0.0, %v405
        %v407 = vpop.f32.mrf.mxu0
        %408 = vmatprep.mubr.f32.mxu0 0.0
        %409 = vmatmul.mubr.f32.gmra.mxu0 %v243
        %v410 = vpop.f32.mrf.mxu0
        %v411 = vadd.f32 0.0, %v410
        %v412 = vpop.f32.mrf.mxu0
        %413 = vmatprep.mubr.f32.mxu0 0.0
        %414 = vmatmul.mubr.f32.gmra.mxu0 %v246
        %v415 = vpop.f32.mrf.mxu0
        %v416 = vadd.f32 0.0, %v415
        %v417 = vpop.f32.mrf.mxu0
        %418 = vmatprep.mubr.f32.mxu0 0.0
        %419 = vmatmul.mubr.f32.gmra.mxu0 %v249
        %v420 = vpop.f32.mrf.mxu0
        %v421 = vadd.f32 0.0, %v420
        %v422 = vpop.f32.mrf.mxu0
        %423 = vmatprep.mubr.f32.mxu0 0.0
        %424 = vmatmul.mubr.f32.gmra.mxu0 %v252
        %v425 = vpop.f32.mrf.mxu0
        %v426 = vadd.f32 0.0, %v425
        %v427 = vpop.f32.mrf.mxu0
        %428 = vmatprep.mubr.f32.mxu0 0.0
        %429 = vmatmul.mubr.f32.gmra.mxu0 %v255
        %v430 = vpop.f32.mrf.mxu0
        %v431 = vadd.f32 0.0, %v430
        %v432 = vpop.f32.mrf.mxu0
        %433 = vmatprep.mubr.f32.mxu0 0.0
        %434 = vmatmul.mubr.f32.gmra.mxu0 %v258
        %v435 = vpop.f32.mrf.mxu0
        %v436 = vadd.f32 0.0, %v435
        %v437 = vpop.f32.mrf.mxu0
        %438 = vmatprep.mubr.f32.mxu0 0.0
        %439 = vmatmul.mubr.f32.gmra.mxu0 %v261
        %v440 = vpop.f32.mrf.mxu0
        %v441 = vadd.f32 0.0, %v440
        %v442 = vpop.f32.mrf.mxu0
        %443 = vmatprep.mubr.f32.mxu0 0.0
        %444 = vmatmul.mubr.f32.gmra.mxu0 %v264
        %v445 = vpop.f32.mrf.mxu0
        %v446 = vadd.f32 0.0, %v445
        %v447 = vpop.f32.mrf.mxu0
        %448 = vmatprep.mubr.f32.mxu0 0.0
        %449 = vmatmul.mubr.f32.gmra.mxu0 %v267
        %v450 = vpop.f32.mrf.mxu0
        %v451 = vadd.f32 0.0, %v450
        %v452 = vpop.f32.mrf.mxu0
        %453 = vmatprep.mubr.f32.mxu0 0.0
        %454 = vmatmul.mubr.f32.gmra.mxu0 %v270
        %v455 = vpop.f32.mrf.mxu0
        %v456 = vadd.f32 0.0, %v455
        %v457 = vpop.f32.mrf.mxu0
        %458 = vmatprep.mubr.f32.mxu0 0.0
        %459 = vmatmul.mubr.f32.gmra.mxu0 %v273
        %v460 = vpop.f32.mrf.mxu0
        %v461 = vadd.f32 0.0, %v460
        %v462 = vpop.f32.mrf.mxu0
        %463 = vmatprep.mubr.f32.mxu0 0.0
        %464 = vmatmul.mubr.f32.gmra.mxu0 %v276
        %v465 = vpop.f32.mrf.mxu0
        %v466 = vadd.f32 0.0, %v465
        %v467 = vpop.f32.mrf.mxu0
        %468 = vmatprep.mubr.f32.mxu0 0.0
        %469 = vmatmul.mubr.f32.gmra.mxu0 %v279
        %v470 = vpop.f32.mrf.mxu0
        %v471 = vadd.f32 0.0, %v470
        %v472 = vpop.f32.mrf.mxu0
        %473 = vmatprep.mubr.f32.mxu0 0.0
        %474 = vmatmul.mubr.f32.gmra.mxu0 %v282
        %v475 = vpop.f32.mrf.mxu0
        %v476 = vadd.f32 0.0, %v475
        %v477 = vpop.f32.mrf.mxu0
        %478 = vmatprep.mubr.f32.mxu0 0.0
        %479 = vmatmul.mubr.f32.gmra.mxu0 %v285
        %v480 = vpop.f32.mrf.mxu0
        %v481 = vadd.f32 0.0, %v480
        %v482 = vpop.f32.mrf.mxu0
        %483 = vmatprep.mubr.f32.mxu0 0.0
        %484 = vmatmul.mubr.f32.gmra.mxu0 %v288
        %v485 = vpop.f32.mrf.mxu0
        %v486 = vadd.f32 0.0, %v485
        %v487 = vpop.f32.mrf.mxu0
        %488 = vmatprep.mubr.f32.mxu0 0.0
        %489 = vmatmul.mubr.f32.gmra.mxu0 %v291
        %v490 = vpop.f32.mrf.mxu0
        %v491 = vadd.f32 0.0, %v490
        %v492 = vpop.f32.mrf.mxu0
        %493 = vmatprep.mubr.f32.mxu0 0.0
        %494 = vmatmul.mubr.f32.gmra.mxu0 %v294
        %v495 = vpop.f32.mrf.mxu0
        %v496 = vadd.f32 0.0, %v495
        %v497 = vpop.f32.mrf.mxu0
        %498 = vmatprep.mubr.f32.mxu0 0.0
        %499 = vmatmul.mubr.f32.gmra.mxu0 %v297
        %v500 = vpop.f32.mrf.mxu0
        %v501 = vadd.f32 0.0, %v500
        %v502 = vpop.f32.mrf.mxu0
        %503 = vmatprep.mubr.f32.mxu0 0.0
        %504 = vmatmul.mubr.f32.gmra.mxu0 %v300
        %v505 = vpop.f32.mrf.mxu0
        %v506 = vadd.f32 0.0, %v505
        %v507 = vpop.f32.mrf.mxu0
        %508 = vmatprep.mubr.f32.mxu0 0.0
        %509 = vmatmul.mubr.f32.gmra.mxu0 %v303
        %v510 = vpop.f32.mrf.mxu0
        %v511 = vadd.f32 0.0, %v510
        %v512 = vpop.f32.mrf.mxu0
        %513 = vmatprep.mubr.f32.mxu0 0.0
        %514 = vmatmul.mubr.f32.gmra.mxu0 %v306
        %v515 = vpop.f32.mrf.mxu0
        %v516 = vadd.f32 0.0, %v515
        %v517 = vpop.f32.mrf.mxu0
        %518 = vmatprep.mubr.f32.mxu0 0.0
        %519 = vmatmul.mubr.f32.gmra.mxu0 %v309
        %v520 = vpop.f32.mrf.mxu0
        %v521 = vadd.f32 0.0, %v520
        %v522 = vpop.f32.mrf.mxu0
        %523 = vmatprep.mubr.f32.mxu0 0.0
        %524 = vmatmul.mubr.f32.gmra.mxu0 %v312
        %v525 = vpop.f32.mrf.mxu0
        %v526 = vadd.f32 0.0, %v525
        %v527 = vpop.f32.mrf.mxu0
        %528 = vmatprep.mubr.f32.mxu0 0.0
        %529 = vmatmul.mubr.f32.gmra.mxu0 %v315
        %v530 = vpop.f32.mrf.mxu0
        %v531 = vadd.f32 0.0, %v530
        %v532 = vpop.f32.mrf.mxu0
        %533 = vmatprep.mubr.f32.mxu0 0.0
        %534 = vmatmul.mubr.f32.gmra.mxu0 %v318
        %v535 = vpop.f32.mrf.mxu0
        %v536 = vadd.f32 0.0, %v535
        %v537 = vpop.f32.mrf.mxu0
        %538 = vmatprep.mubr.f32.mxu0 0.0
        %539 = vmatmul.mubr.f32.gmra.mxu0 %v321
        %v540 = vpop.f32.mrf.mxu0
        %v541 = vadd.f32 0.0, %v540
        %v542 = vpop.f32.mrf.mxu0
        %543 = vmatprep.mubr.f32.mxu0 0.0
        %544 = vmatmul.mubr.f32.gmra.mxu0 %v324
        %v545 = vpop.f32.mrf.mxu0
        %v546 = vadd.f32 0.0, %v545
        %v547 = vpop.f32.mrf.mxu0
        %548 = vmatprep.mubr.f32.mxu0 0.0
        %549 = vmatmul.mubr.f32.gmra.mxu0 %v327
        %v550 = vpop.f32.mrf.mxu0
        %v551 = vadd.f32 0.0, %v550
        %v552 = vpop.f32.mrf.mxu0
        %553 = vmatprep.mubr.f32.mxu0 0.0
        %554 = vmatmul.mubr.f32.gmra.mxu0 %v330
        %v555 = vpop.f32.mrf.mxu0
        %v556 = vadd.f32 0.0, %v555
        %v557 = vpop.f32.mrf.mxu0
        %558 = vmatprep.mubr.f32.mxu0 0.0
        %559 = vmatmul.mubr.f32.gmra.mxu0 %v333
        %v560 = vpop.f32.mrf.mxu0
        %v561 = vadd.f32 0.0, %v560
        %v562 = vpop.f32.mrf.mxu0
        %563 = vdwg.mxu0
        %564 = vst [vmem:[%s183] sm:$0xff] %v406
        %565 = vst [vmem:[%s183 + $0x8] sm:$0xff] %v411
        %566 = vst [vmem:[%s183 + $0x10] sm:$0xff] %v416
        %567 = vst [vmem:[%s183 + $0x18] sm:$0xff] %v421
        %568 = vst [vmem:[%s183 + $0x20] sm:$0xff] %v426
        %569 = vst [vmem:[%s183 + $0x28] sm:$0xff] %v431
        %570 = vst [vmem:[%s183 + $0x30] sm:$0xff] %v436
        %571 = vst [vmem:[%s183 + $0x38] sm:$0xff] %v441
        %572 = vst [vmem:[%s183 + $0x40] sm:$0xff] %v446
        %573 = vst [vmem:[%s183 + $0x48] sm:$0xff] %v451
        %574 = vst [vmem:[%s183 + $0x50] sm:$0xff] %v456
        %575 = vst [vmem:[%s183 + $0x58] sm:$0xff] %v461
        %576 = vst [vmem:[%s183 + $0x60] sm:$0xff] %v466
        %577 = vst [vmem:[%s183 + $0x68] sm:$0xff] %v471
        %578 = vst [vmem:[%s183 + $0x70] sm:$0xff] %v476
        %579 = vst [vmem:[%s183 + $0x78] sm:$0xff] %v481
        %580 = vst [vmem:[%s183 + $0x80] sm:$0xff] %v486
        %581 = vst [vmem:[%s183 + $0x88] sm:$0xff] %v491
        %582 = vst [vmem:[%s183 + $0x90] sm:$0xff] %v496
        %583 = vst [vmem:[%s183 + $0x98] sm:$0xff] %v501
        %584 = vst [vmem:[%s183 + $0xa0] sm:$0xff] %v506
        %585 = vst [vmem:[%s183 + $0xa8] sm:$0xff] %v511
        %586 = vst [vmem:[%s183 + $0xb0] sm:$0xff] %v516
        %587 = vst [vmem:[%s183 + $0xb8] sm:$0xff] %v521
        %588 = vst [vmem:[%s183 + $0xc0] sm:$0xff] %v526
        %589 = vst [vmem:[%s183 + $0xc8] sm:$0xff] %v531
        %590 = vst [vmem:[%s183 + $0xd0] sm:$0xff] %v536
        %591 = vst [vmem:[%s183 + $0xd8] sm:$0xff] %v541
        %592 = vst [vmem:[%s183 + $0xe0] sm:$0xff] %v546
        %593 = vst [vmem:[%s183 + $0xe8] sm:$0xff] %v551
        %594 = vst [vmem:[%s183 + $0xf0] sm:$0xff] %v556
        %595 = vst [vmem:[%s183 + $0xf8] sm:$0xff] %v561
        %v596 = vld [vmem:[#allocation4] sm:$0x1]
        %v597 = vadd.f32 %v406, %v411
        %v598 = vadd.f32 %v597, %v416
        %v599 = vadd.f32 %v598, %v421
        %v600 = vadd.f32 %v599, %v426
        %v601 = vadd.f32 %v600, %v431
        %v602 = vadd.f32 %v601, %v436
        %v603 = vadd.f32 %v602, %v441
        %v604 = vadd.f32 %v603, %v446
        %v605 = vadd.f32 %v604, %v451
        %v606 = vadd.f32 %v605, %v456
        %v607 = vadd.f32 %v606, %v461
        %v608 = vadd.f32 %v607, %v466
        %v609 = vadd.f32 %v608, %v471
        %v610 = vadd.f32 %v609, %v476
        %v611 = vadd.f32 %v610, %v481
        %v612 = vadd.f32 %v611, %v486
        %v613 = vadd.f32 %v612, %v491
        %v614 = vadd.f32 %v613, %v496
        %v615 = vadd.f32 %v614, %v501
        %v616 = vadd.f32 %v615, %v506
        %v617 = vadd.f32 %v616, %v511
        %v618 = vadd.f32 %v617, %v516
        %v619 = vadd.f32 %v618, %v521
        %v620 = vadd.f32 %v619, %v526
        %v621 = vadd.f32 %v620, %v531
        %v622 = vadd.f32 %v621, %v536
        %v623 = vadd.f32 %v622, %v541
        %v624 = vadd.f32 %v623, %v546
        %v625 = vadd.f32 %v624, %v551
        %v626 = vadd.f32 %v625, %v556
        %v627 = vadd.f32 %v626, %v561
        %v628 = vrot.slane %v627, 4
        %v629 = vadd.f32 %v627, %v628
        %v630 = vrot.slane %v629, 2
        %v631 = vadd.f32 %v629, %v630
        %v632 = vrot.slane %v631, 1
        %v633 = vadd.f32 %v631, %v632
        %v634 = vadd.f32 %v596, %v633
        %635 = vst [vmem:[#allocation4] sm:$0x1] %v634
        %v636 = vld [vmem:[#allocation6] sm:$0x1]
        %v637 = vmul.f32 %v406, %v406
        %v638 = vmul.f32 %v411, %v411
        %v639 = vmul.f32 %v416, %v416
        %v640 = vmul.f32 %v421, %v421
        %v641 = vmul.f32 %v426, %v426
        %v642 = vmul.f32 %v431, %v431
        %v643 = vmul.f32 %v436, %v436
        %v644 = vmul.f32 %v441, %v441
        %v645 = vmul.f32 %v446, %v446
        %v646 = vmul.f32 %v451, %v451
        %v647 = vmul.f32 %v456, %v456
        %v648 = vmul.f32 %v461, %v461
        %v649 = vmul.f32 %v466, %v466
        %v650 = vmul.f32 %v471, %v471
        %v651 = vmul.f32 %v476, %v476
        %v652 = vmul.f32 %v481, %v481
        %v653 = vmul.f32 %v486, %v486
        %v654 = vmul.f32 %v491, %v491
        %v655 = vmul.f32 %v496, %v496
        %v656 = vmul.f32 %v501, %v501
        %v657 = vmul.f32 %v506, %v506
        %v658 = vmul.f32 %v511, %v511
        %v659 = vmul.f32 %v516, %v516
        %v660 = vmul.f32 %v521, %v521
        %v661 = vmul.f32 %v526, %v526
        %v662 = vmul.f32 %v531, %v531
        %v663 = vmul.f32 %v536, %v536
        %v664 = vmul.f32 %v541, %v541
        %v665 = vmul.f32 %v546, %v546
        %v666 = vmul.f32 %v551, %v551
        %v667 = vmul.f32 %v556, %v556
        %v668 = vmul.f32 %v561, %v561
        %v669 = vadd.f32 %v637, %v638
        %v670 = vadd.f32 %v669, %v639
        %v671 = vadd.f32 %v670, %v640
        %v672 = vadd.f32 %v671, %v641
        %v673 = vadd.f32 %v672, %v642
        %v674 = vadd.f32 %v673, %v643
        %v675 = vadd.f32 %v674, %v644
        %v676 = vadd.f32 %v675, %v645
        %v677 = vadd.f32 %v676, %v646
        %v678 = vadd.f32 %v677, %v647
        %v679 = vadd.f32 %v678, %v648
        %v680 = vadd.f32 %v679, %v649
        %v681 = vadd.f32 %v680, %v650
        %v682 = vadd.f32 %v681, %v651
        %v683 = vadd.f32 %v682, %v652
        %v684 = vadd.f32 %v683, %v653
        %v685 = vadd.f32 %v684, %v654
        %v686 = vadd.f32 %v685, %v655
        %v687 = vadd.f32 %v686, %v656
        %v688 = vadd.f32 %v687, %v657
        %v689 = vadd.f32 %v688, %v658
        %v690 = vadd.f32 %v689, %v659
        %v691 = vadd.f32 %v690, %v660
        %v692 = vadd.f32 %v691, %v661
        %v693 = vadd.f32 %v692, %v662
        %v694 = vadd.f32 %v693, %v663
        %v695 = vadd.f32 %v694, %v664
        %v696 = vadd.f32 %v695, %v665
        %v697 = vadd.f32 %v696, %v666
        %v698 = vadd.f32 %v697, %v667
        %v699 = vadd.f32 %v698, %v668
        %v700 = vrot.slane %v699, 4
        %v701 = vadd.f32 %v699, %v700
        %v702 = vrot.slane %v701, 2
        %v703 = vadd.f32 %v701, %v702
        %v704 = vrot.slane %v703, 1
        %v705 = vadd.f32 %v703, %v704
        %v706 = vadd.f32 %v636, %v705
        %707 = vst [vmem:[#allocation6] sm:$0x1] %v706
        %s708 = sand.u32 %s75, 1
        %s709 = scalar_lea.sflag [#allocation3], %s708
        %s710 = sand.u32 %s75, 1
        %s711 = smul.addr %s710, 256
        %s712 = scalar_lea.vmem [#allocation2], %s711
        // Predicated region
        $region33: #{tpu_custom_call.1} parent=27 // pred_check
          %p713 = pneg %p85
        $region34: #{tpu_custom_call.1} parent=27 // pred_check_branch
          %715 = sbr.rel (%p713) target = $region36
        $region35: #{tpu_custom_call.1} parent=27 // pred_region
          %s716 = smul.u32 32, %s20
          %s718 = ssub.s32 4096, 4096
          %719 = vsyncadd %s709, %s718
          %s720 = smul.addr %s716, 128
          %s721 = scalar_lea.hbm %s2, %s720
          %s722 = sshll.u32 %s712, 4
          %s723 = int_to_ptr.vmem [resolvable:$true] %s722
          %728 = dma.vmem_to_hbm [thread:$0]  %s723, 4096, %s721, %s709, 128, 128, 8
        $region36: #{tpu_custom_call.1} parent=27 // pred_fallthru
          _
        // Predicated region
        $region37: #{tpu_custom_call.1} parent=27 // pred_check
          %p729 = pneg %p106
        $region38: #{tpu_custom_call.1} parent=27 // pred_check_branch
          %731 = sbr.rel (%p729) target = $region40
        $region39: #{tpu_custom_call.1} parent=27 // pred_region
          %s733 = ssub.s32 16, 16
          %734 = vsyncadd [#allocation5], %s733
          %s736 = sshll.u32 [#allocation4], 4
          %s737 = int_to_ptr.vmem [resolvable:$true] %s736
          %739 = dma.vmem_to_hbm [thread:$0]  %s737, 16, %s3, [#allocation5]
        $region40: #{tpu_custom_call.1} parent=27 // pred_fallthru
          _
        // Predicated region
        $region41: #{tpu_custom_call.1} parent=27 // pred_check
          %p740 = pneg %p127
        $region42: #{tpu_custom_call.1} parent=27 // pred_check_branch
          %742 = sbr.rel (%p740) target = $region44
        $region43: #{tpu_custom_call.1} parent=27 // pred_region
          %s744 = ssub.s32 16, 16
          %745 = vsyncadd [#allocation5], %s744
          %s747 = sshll.u32 [#allocation6], 4
          %s748 = int_to_ptr.vmem [resolvable:$true] %s747
          %750 = dma.vmem_to_hbm [thread:$0]  %s748, 16, %s4, [#allocation5]
        $region44: #{tpu_custom_call.1} parent=27 // pred_fallthru
          _
        // Predicated region
        $region45: #{tpu_custom_call.1} parent=27 // pred_check
          %p751 = pneg %p106
        $region46: #{tpu_custom_call.1} parent=27 // pred_check_branch
          %753 = sbr.rel (%p751) target = $region48
        $region47: #{tpu_custom_call.1} parent=27 // pred_region
          %754 = dma.done [#allocation5], 16
        $region48: #{tpu_custom_call.1} parent=27 // pred_fallthru
          _
        // Predicated region
        $region49: #{tpu_custom_call.1} parent=27 // pred_check
          %p755 = pneg %p127
        $region50: #{tpu_custom_call.1} parent=27 // pred_check_branch
          %757 = sbr.rel (%p755) target = $region52
        $region51: #{tpu_custom_call.1} parent=27 // pred_region
          %758 = dma.done [#allocation5], 16
        $region52: #{tpu_custom_call.1} parent=27 // pred_fallthru
          _
      $region28: #{tpu_custom_call.1} parent=5 // pred_fallthru
        _
      %p759 = scmp.le.s32.totalorder 2, %s15
      // Predicated region
      $region53: #{tpu_custom_call.1} parent=5 // pred_check
        %p760 = pneg %p759
      $region54: #{tpu_custom_call.1} parent=5 // pred_check_branch
        %762 = sbr.rel (%p760) target = $region56
      $region55: #{tpu_custom_call.1} parent=5 // pred_region
        %s763 = ssub.s32 %s15, 2
        // Predicated region
        $region57: #{tpu_custom_call.1} parent=55 // pred_check
          %p764 = pneg %p91
        $region58: #{tpu_custom_call.1} parent=55 // pred_check_branch
          %766 = sbr.rel (%p764) target = $region60
        $region59: #{tpu_custom_call.1} parent=55 // pred_region
          %s767 = sand.u32 %s76, 1
          %s768 = scalar_lea.sflag [#allocation3], %s767
          %s769 = sand.u32 %s76, 1
          %s770 = smul.addr %s769, 256
          %s771 = scalar_lea.vmem [#allocation2], %s770
          %772 = dma.done %s768, 4096
        $region60: #{tpu_custom_call.1} parent=55 // pred_fallthru
          _
      $region56: #{tpu_custom_call.1} parent=5 // pred_fallthru
        _
    $region6: #{tpu_custom_call.1} parent=1 // loop_footer
      %s19 = sadd.s32 1, %s15
    $region7: #{tpu_custom_call.1} parent=1 // loop_footer_branch
      %14 = sbr.rel target = $region3
    $region8: #{tpu_custom_call.1} parent=1 // loop_exit
      _
    %773 = vsyncpa [#allocation3], 1
    %s774 = scalar_lea.sflag [#allocation3], 1
    %775 = vsyncpa %s774, 1
    %776 = vsyncpa [#allocation5], 1

</llo_original>
